<compile_context>
chip_gen: v7x
topology: tpu7x:2x2x1
jax: 0.10.0
libtpu: 0.0.40
codegen_flags: <defaults>
</compile_context>

<pallas_src>
import math
import functools

import jax
import jax.numpy as jnp
from jax.experimental import pallas as pl
from jax.experimental.pallas import tpu as pltpu


def _round_up(x, m):
    return ((x + m - 1) // m) * m


def _eps_greedy_kernel(q_ref, t_ref, coin_ref, rnd_ref, act_ref, eps_ref, *,
                       num_actions, eps_start, eps_finish, delta):
    # Transposed, lane-dense layout: rows on lanes, actions on sublanes.
    q = q_ref[...]            # (N, TILE_R) f32
    t = t_ref[...]            # (1, TILE_R) f32

    # epsilon = clamp(eps_start - delta * t, min=eps_finish)   (linear decay)
    eps = jnp.maximum(jnp.float32(eps_start) - jnp.float32(delta) * t,
                      jnp.float32(eps_finish))

    # greedy = argmax over the sublane (action) axis, first occurrence on ties.
    sub_iota = jax.lax.broadcasted_iota(jnp.int32, q.shape, 0)
    maxv = jnp.max(q, axis=0, keepdims=True)                       # (1, TILE_R)
    greedy = jnp.min(jnp.where(q == maxv, sub_iota, jnp.int32(num_actions)),
                     axis=0, keepdims=True)                        # (1, TILE_R)

    # exploration coin flip against pre-drawn uniforms / random actions.
    explore = coin_ref[...] < eps                                  # (1, TILE_R)
    act_ref[...] = jnp.where(explore, rnd_ref[...], greedy).astype(jnp.int32)
    eps_ref[...] = eps


def epsilon_greedy_select(agent_qs, t, *, key,
                          epsilon_start=1.0, epsilon_finish=0.05,
                          anneal_time=5000.0, max_tile_r=8192):
    """JAX/Pallas equivalent of EpsilonGreedyActionSelector.forward ('linear')."""
    delta = (epsilon_start - epsilon_finish) / float(anneal_time)

    lead = agent_qs.shape[:-1]
    N = agent_qs.shape[-1]
    R = int(math.prod(lead)) if lead else 1

    # Random draws (plain XLA): coin flip uniform in [0,1) and randint in [0,N).
    k_coin, k_act = jax.random.split(key)
    coin = jax.random.uniform(k_coin, (R,), dtype=jnp.float32)
    rand_act = jax.random.randint(k_act, (R,), 0, N, dtype=jnp.int32)

    # Transpose to lane-dense layout: rows on the lane axis.
    q_t = agent_qs.reshape(R, N).astype(jnp.float32).T       # (N, R)
    t_row = jnp.asarray(t, dtype=jnp.float32).reshape(1, R)  # (1, R)
    coin = coin.reshape(1, R)
    rand_act = rand_act.reshape(1, R)

    # Lane tile: large enough to amortize per-step overhead, small enough that
    # the double-buffered q tile stays well under even v5e's scoped VMEM.
    max_lane_tile = max(128, ((2 * 1024 * 1024) // (4 * N)) // 128 * 128)
    tile = min(max_tile_r, max_lane_tile, _round_up(R, 128))
    R_pad = _round_up(R, tile)
    pad = R_pad - R
    if pad:
        q_t = jnp.pad(q_t, ((0, 0), (0, pad)))
        t_row = jnp.pad(t_row, ((0, 0), (0, pad)))
        coin = jnp.pad(coin, ((0, 0), (0, pad)), constant_values=1.0)
        rand_act = jnp.pad(rand_act, ((0, 0), (0, pad)))

    kernel = functools.partial(
        _eps_greedy_kernel,
        num_actions=N,
        eps_start=float(epsilon_start),
        eps_finish=float(epsilon_finish),
        delta=float(delta),
    )

    grid = (R_pad // tile,)
    row_spec = pl.BlockSpec((1, tile), lambda i: (0, i))

    actions, epsilon = pl.pallas_call(
        kernel,
        out_shape=(
            jax.ShapeDtypeStruct((1, R_pad), jnp.int32),
            jax.ShapeDtypeStruct((1, R_pad), jnp.float32),
        ),
        grid=grid,
        in_specs=[
            pl.BlockSpec((N, tile), lambda i: (0, i)),   # agent_qs^T
            row_spec,                                    # t
            row_spec,                                    # uniform coin
            row_spec,                                    # random actions
        ],
        out_specs=(row_spec, row_spec),
        compiler_params=pltpu.CompilerParams(
            dimension_semantics=("parallel",)),          # megacore on v7x
    )(q_t, t_row, coin, rand_act)

    actions = actions[0, :R].reshape(lead + (1,))
    epsilon = epsilon[0, :R].reshape(lead + (1,))
    return actions, epsilon


if __name__ == "__main__":
    key = jax.random.PRNGKey(0)
    kq, ksel, ksel2 = jax.random.split(key, 3)

    batch, agents, num_actions = 2, 4, 8
    agent_qs = jax.random.normal(kq, (batch, agents, num_actions), dtype=jnp.float32)
    # per-(env, agent) environment-step counters
    t = jnp.arange(batch * agents, dtype=jnp.float32).reshape(batch, agents) * 500.0

    actions, epsilon = epsilon_greedy_select(agent_qs, t, key=ksel)
    jax.block_until_ready((actions, epsilon))

    assert actions.shape == (batch, agents, 1)
    assert epsilon.shape == (batch, agents, 1)
    assert actions.dtype == jnp.int32
    # epsilon must match clamp(start - delta * t, finish)
    eps_ref = jnp.maximum(1.0 - (1.0 - 0.05) / 5000.0 * t, 0.05)[..., None]
    assert jnp.allclose(epsilon, eps_ref, atol=1e-6)
    # actions must be valid indices
    assert jnp.all((actions >= 0) & (actions < num_actions))

    # Deterministic greedy check: with epsilon == 0 the kernel must return argmax.
    g_actions, g_eps = epsilon_greedy_select(
        agent_qs, t, key=ksel2, epsilon_start=0.0, epsilon_finish=0.0)
    jax.block_until_ready((g_actions, g_eps))
    assert jnp.allclose(g_eps, 0.0)
    assert jnp.all(g_actions[..., 0] ==
                   jnp.argmax(agent_qs, axis=-1).astype(jnp.int32))

    print("KERNEL_OK")
</pallas_src>

<mosaic_0001>
module attributes {stable_mosaic.version = 11 : i64} {
  func.func @_eps_greedy_kernel(%arg0: i32, %arg1: memref<8x128xf32, #tpu.memory_space<vmem>>, %arg2: memref<1x128xf32, #tpu.memory_space<vmem>>, %arg3: memref<1x128xf32, #tpu.memory_space<vmem>>, %arg4: memref<1x128xi32, #tpu.memory_space<vmem>>, %arg5: memref<1x128xi32, #tpu.memory_space<vmem>>, %arg6: memref<1x128xf32, #tpu.memory_space<vmem>>) attributes {dimension_semantics = [#tpu.dimension_semantics<parallel>], iteration_bounds = array<i64: 1>, scalar_prefetch = 0 : i64, scratch_operands = 0 : i64, tpu.core_type = #tpu.core_type<tc>, window_params = [{transform_indices = @transform_0, window_bounds = array<i64: 8, 128>}, {transform_indices = @transform_1, window_bounds = array<i64: 1, 128>}, {transform_indices = @transform_2, window_bounds = array<i64: 1, 128>}, {transform_indices = @transform_3, window_bounds = array<i64: 1, 128>}, {transform_indices = @transform_4, window_bounds = array<i64: 1, 128>}, {transform_indices = @transform_5, window_bounds = array<i64: 1, 128>}]} {
    %c0 = arith.constant 0 : index
    %c0_0 = arith.constant 0 : index
    %0 = vector.load %arg1[%c0, %c0_0] : memref<8x128xf32, #tpu.memory_space<vmem>>, vector<8x128xf32>
    %c0_1 = arith.constant 0 : index
    %c0_2 = arith.constant 0 : index
    %1 = vector.load %arg2[%c0_1, %c0_2] : memref<1x128xf32, #tpu.memory_space<vmem>>, vector<1x128xf32>
    %cst = arith.constant 1.900000e-04 : f32
    %2 = vector.broadcast %cst : f32 to vector<1x128xf32>
    %3 = arith.mulf %2, %1 : vector<1x128xf32>
    %cst_3 = arith.constant 1.000000e+00 : f32
    %4 = vector.broadcast %cst_3 : f32 to vector<1x128xf32>
    %5 = arith.subf %4, %3 : vector<1x128xf32>
    %cst_4 = arith.constant 5.000000e-02 : f32
    %6 = vector.broadcast %cst_4 : f32 to vector<1x128xf32>
    %7 = arith.maximumf %5, %6 : vector<1x128xf32>
    %8 = tpu.iota {dimensions = array<i32: 0>} : vector<8x128xi32>
    %cst_5 = arith.constant dense<0xFF800000> : vector<128xf32>
    %9 = vector.multi_reduction <maximumf>, %0, %cst_5 [0] : vector<8x128xf32> to vector<128xf32>
    %10 = vector.shape_cast %9 : vector<128xf32> to vector<1x128xf32>
    %11 = vector.broadcast %10 : vector<1x128xf32> to vector<8x128xf32>
    %12 = arith.cmpf oeq, %0, %11 : vector<8x128xf32>
    %c8_i32 = arith.constant 8 : i32
    %13 = vector.broadcast %c8_i32 : i32 to vector<8x128xi32>
    %14 = arith.select %12, %8, %13 : vector<8x128xi1>, vector<8x128xi32>
    %cst_6 = arith.constant dense<2147483647> : vector<128xi32>
    %15 = vector.multi_reduction <minsi>, %14, %cst_6 [0] : vector<8x128xi32> to vector<128xi32>
    %16 = vector.shape_cast %15 : vector<128xi32> to vector<1x128xi32>
    %c0_7 = arith.constant 0 : index
    %c0_8 = arith.constant 0 : index
    %17 = vector.load %arg3[%c0_7, %c0_8] : memref<1x128xf32, #tpu.memory_space<vmem>>, vector<1x128xf32>
    %18 = arith.cmpf olt, %17, %7 : vector<1x128xf32>
    %c0_9 = arith.constant 0 : index
    %c0_10 = arith.constant 0 : index
    %19 = vector.load %arg4[%c0_9, %c0_10] : memref<1x128xi32, #tpu.memory_space<vmem>>, vector<1x128xi32>
    %20 = arith.select %18, %19, %16 : vector<1x128xi1>, vector<1x128xi32>
    %c0_11 = arith.constant 0 : index
    %c0_12 = arith.constant 0 : index
    %21 = vector.load %arg5[%c0_11, %c0_12] : memref<1x128xi32, #tpu.memory_space<vmem>>, vector<1x128xi32>
    tpu.vector_store %arg5[%c0_11, %c0_12], %20 {strides = array<i32>} : memref<1x128xi32, #tpu.memory_space<vmem>>, vector<1x128xi32>,
    %c0_13 = arith.constant 0 : index
    %c0_14 = arith.constant 0 : index
    %22 = vector.load %arg6[%c0_13, %c0_14] : memref<1x128xf32, #tpu.memory_space<vmem>>, vector<1x128xf32>
    tpu.vector_store %arg6[%c0_13, %c0_14], %7 {strides = array<i32>} : memref<1x128xf32, #tpu.memory_space<vmem>>, vector<1x128xf32>,
    return
  }
  func.func @transform_0(%arg0: i32) -> (i32, i32) {
    %c0_i32 = arith.constant 0 : i32
    %c0_i32_0 = arith.constant 0 : i32
    return %c0_i32, %arg0 : i32, i32
  }
  func.func @transform_1(%arg0: i32) -> (i32, i32) {
    %c0_i32 = arith.constant 0 : i32
    %c0_i32_0 = arith.constant 0 : i32
    return %c0_i32, %arg0 : i32, i32
  }
  func.func @transform_2(%arg0: i32) -> (i32, i32) {
    %c0_i32 = arith.constant 0 : i32
    %c0_i32_0 = arith.constant 0 : i32
    return %c0_i32, %arg0 : i32, i32
  }
  func.func @transform_3(%arg0: i32) -> (i32, i32) {
    %c0_i32 = arith.constant 0 : i32
    %c0_i32_0 = arith.constant 0 : i32
    return %c0_i32, %arg0 : i32, i32
  }
  func.func @transform_4(%arg0: i32) -> (i32, i32) {
    %c0_i32 = arith.constant 0 : i32
    %c0_i32_0 = arith.constant 0 : i32
    return %c0_i32, %arg0 : i32, i32
  }
  func.func @transform_5(%arg0: i32) -> (i32, i32) {
    %c0_i32 = arith.constant 0 : i32
    %c0_i32_0 = arith.constant 0 : i32
    return %c0_i32, %arg0 : i32, i32
  }
}

</mosaic_0001>

<llo_original>
// kernel: tpu_custom_call.1
$region0: #{tpu_custom_call.1}
  #allocation0 [shape = 'u32[]', space=smem, size = 0x4, offset = 0x4, fixed_abs, tag = 'smem constant byte address 0x4 - core index']
  #allocation1 [shape = 'u32[144,128]{1,0:T(1,128)}', space=vmem, size = 0x12000, scoped, tag = 'internal scratch']
  %s0 = inlined_call_operand.hbm [shape: f32[8,128], index: 0, kind: input, shape index: {}]
  %s1 = inlined_call_operand.vmem [shape: f32[1,128], index: 1, kind: input, shape index: {}]
  %s2 = inlined_call_operand.vmem [shape: f32[1,128], index: 2, kind: input, shape index: {}]
  %s3 = inlined_call_operand.vmem [shape: s32[1,128], index: 3, kind: input, shape index: {}]
  %s4 = inlined_call_operand.hbm [shape: s32[1,128], index: 4, kind: output, shape index: {0}]
  %s5 = inlined_call_operand.hbm [shape: f32[1,128], index: 5, kind: output, shape index: {1}]
  %6 = xla_tuple %s4, %s5
  %s7 = sld [smem:[#allocation0]]
  $region38: #{tpu_custom_call.1} parent=0
    _
  %s9 = ssub.s32 1, %s7
  %s10 = scalar_select 0, %s9, %s7
  $region1: #{tpu_custom_call.1} parent=0
    #allocation2 [shape = 'u8[4096]{0}', space=vmem, size = 0x1000, scoped, tag = 'input window, operand 0, single buffered']
    #allocation3 [shape = 's32[1]{0}', space=sflag, size = 0x4, scoped, tag = 'scoped memory for tpu_custom_call.1']
    #allocation4 [shape = 's32[1]{0}', space=sflag, size = 0x4, scoped, tag = 'scoped memory for tpu_custom_call.1']
    #allocation5 [shape = 'u8[512]{0}', space=vmem, size = 0x400, scoped, tag = 'output window, operand 0, single buffered']
    #allocation6 [shape = 'u8[512]{0}', space=vmem, size = 0x400, scoped, tag = 'output window, operand 1, single buffered']
    #allocation7 [shape = 's32[1]{0}', space=sflag, size = 0x4, scoped, tag = 'scoped memory for tpu_custom_call.1']
    %11 = vsyncpa [#allocation3], 0
    %12 = vsyncpa [#allocation4], 0
    %13 = vsyncpa [#allocation7], 0
    // Predicated region
    $region2: #{tpu_custom_call.1} parent=1 // pred_check
      _
    $region3: #{tpu_custom_call.1} parent=1 // pred_check_branch
      %15 = sbr.rel (0) target = $region5
    $region4: #{tpu_custom_call.1} parent=1 // pred_region
      %s17 = ssub.s32 128, 128
      %18 = vsyncadd [#allocation3], %s17
      %s20 = sshll.u32 [#allocation2], 4
      %s21 = int_to_ptr.vmem [resolvable:$true] %s20
      %23 = dma.hbm_to_vmem [thread:$0]  %s0, 128, %s21, [#allocation3]
    $region5: #{tpu_custom_call.1} parent=1 // pred_fallthru
      _
    // Predicated region
    $region6: #{tpu_custom_call.1} parent=1 // pred_check
      _
    $region7: #{tpu_custom_call.1} parent=1 // pred_check_branch
      %25 = sbr.rel (0) target = $region9
    $region8: #{tpu_custom_call.1} parent=1 // pred_region
      _
    $region9: #{tpu_custom_call.1} parent=1 // pred_fallthru
      _
    // Predicated region
    $region10: #{tpu_custom_call.1} parent=1 // pred_check
      _
    $region11: #{tpu_custom_call.1} parent=1 // pred_check_branch
      %27 = sbr.rel (0) target = $region13
    $region12: #{tpu_custom_call.1} parent=1 // pred_region
      _
    $region13: #{tpu_custom_call.1} parent=1 // pred_fallthru
      _
    // Predicated region
    $region14: #{tpu_custom_call.1} parent=1 // pred_check
      _
    $region15: #{tpu_custom_call.1} parent=1 // pred_check_branch
      %29 = sbr.rel (0) target = $region17
    $region16: #{tpu_custom_call.1} parent=1 // pred_region
      _
    $region17: #{tpu_custom_call.1} parent=1 // pred_fallthru
      _
    // Predicated region
    $region18: #{tpu_custom_call.1} parent=1 // pred_check
      _
    $region19: #{tpu_custom_call.1} parent=1 // pred_check_branch
      %31 = sbr.rel (0) target = $region21
    $region20: #{tpu_custom_call.1} parent=1 // pred_region
      %32 = dma.done [#allocation3], 128
    $region21: #{tpu_custom_call.1} parent=1 // pred_fallthru
      _
    %v33 = vld [vmem:[#allocation2] sm:$0xff]
    %v34 = vld [vmem:[%s1] sm:$0x1]
    %v35 = vmul.f32 %v34, 0.00019
    %v36 = vsub.f32 1.0, %v35
    %v37 = vmax.f32 %v36, 0.05
    %v38 = vlaneseq
    %v39 = vshrl.u32 %v38, 7
    %v40 = vrot.slane %v33, 4
    %v41 = vmax.f32 %v33, %v40
    %v42 = vrot.slane %v41, 2
    %v43 = vmax.f32 %v41, %v42
    %v44 = vrot.slane %v43, 1
    %v45 = vmax.f32 %v43, %v44
    %vm46 = vcmp.eq.f32.partialorder %v33, %v45
    %v47 = vsel %vm46, %v39, 8
    %v48 = vrot.slane %v47, 4
    %vm49 = vcmp.lt.s32.totalorder %v47, %v48
    %v50 = vsel %vm49, %v47, %v48
    %v51 = vrot.slane %v50, 2
    %vm52 = vcmp.lt.s32.totalorder %v50, %v51
    %v53 = vsel %vm52, %v50, %v51
    %v54 = vrot.slane %v53, 1
    %vm55 = vcmp.lt.s32.totalorder %v53, %v54
    %v56 = vsel %vm55, %v53, %v54
    %v57 = vld [vmem:[%s2] sm:$0x1]
    %vm58 = vcmp.lt.f32.partialorder %v57, %v37
    %v59 = vld [vmem:[%s3] sm:$0x1]
    %v60 = vsel %vm58, %v59, %v56
    %61 = vst [vmem:[#allocation5] sm:$0x1] %v60
    %62 = vst [vmem:[#allocation6] sm:$0x1] %v37
    // Predicated region
    $region22: #{tpu_custom_call.1} parent=1 // pred_check
      _
    $region23: #{tpu_custom_call.1} parent=1 // pred_check_branch
      %64 = sbr.rel (0) target = $region25
    $region24: #{tpu_custom_call.1} parent=1 // pred_region
      %s66 = ssub.s32 16, 16
      %67 = vsyncadd [#allocation4], %s66
      %s69 = sshll.u32 [#allocation5], 4
      %s70 = int_to_ptr.vmem [resolvable:$true] %s69
      %72 = dma.vmem_to_hbm [thread:$0]  %s70, 16, %s4, [#allocation4]
    $region25: #{tpu_custom_call.1} parent=1 // pred_fallthru
      _
    // Predicated region
    $region26: #{tpu_custom_call.1} parent=1 // pred_check
      _
    $region27: #{tpu_custom_call.1} parent=1 // pred_check_branch
      %74 = sbr.rel (0) target = $region29
    $region28: #{tpu_custom_call.1} parent=1 // pred_region
      %s76 = ssub.s32 16, 16
      %77 = vsyncadd [#allocation7], %s76
      %s79 = sshll.u32 [#allocation6], 4
      %s80 = int_to_ptr.vmem [resolvable:$true] %s79
      %82 = dma.vmem_to_hbm [thread:$0]  %s80, 16, %s5, [#allocation7]
    $region29: #{tpu_custom_call.1} parent=1 // pred_fallthru
      _
    // Predicated region
    $region30: #{tpu_custom_call.1} parent=1 // pred_check
      _
    $region31: #{tpu_custom_call.1} parent=1 // pred_check_branch
      %84 = sbr.rel (0) target = $region33
    $region32: #{tpu_custom_call.1} parent=1 // pred_region
      %85 = dma.done [#allocation4], 16
    $region33: #{tpu_custom_call.1} parent=1 // pred_fallthru
      _
    // Predicated region
    $region34: #{tpu_custom_call.1} parent=1 // pred_check
      _
    $region35: #{tpu_custom_call.1} parent=1 // pred_check_branch
      %87 = sbr.rel (0) target = $region37
    $region36: #{tpu_custom_call.1} parent=1 // pred_region
      %88 = dma.done [#allocation7], 16
    $region37: #{tpu_custom_call.1} parent=1 // pred_fallthru
      _
    %89 = vsyncpa [#allocation3], 1
    %90 = vsyncpa [#allocation4], 1
    %91 = vsyncpa [#allocation7], 1

</llo_original>
